<compile_context>
chip_gen: v7x
topology: tpu7x:2x2x1
jax: 0.10.0
libtpu: 0.0.40
codegen_flags: <defaults>
</compile_context>

<pallas_src>
import functools

import jax
import jax.numpy as jnp
from jax.experimental import pallas as pl
from jax.experimental.pallas import tpu as pltpu


_LANE = 128                                # lane width / output-tile granularity
_TARGET_TILE_BYTES = 4 * 1024 * 1024       # per input buffer (double-buffered -> 8 MiB)
_FAST_PATH_BYTES = 4 * 1024 * 1024         # whole-array-in-VMEM threshold
_VMEM_LIMIT_BYTES = 32 * 1024 * 1024       # explicit scoped-VMEM budget (safe on v5e/v6e/v7x)


def _round_up(v: int, m: int) -> int:
    return ((v + m - 1) // m) * m


def _round_down(v: int, m: int) -> int:
    return (v // m) * m


def _dim_avg_small_kernel(x_ref, o_ref):
    # Whole array resident in VMEM: reduce in f32 and store (N, 1) directly.
    x = x_ref[...].astype(jnp.float32)
    o_ref[...] = jnp.mean(x, axis=1, keepdims=True).astype(o_ref.dtype)


def _dim_avg_tiled_kernel(x_ref, o_ref, acc_ref, *, inv_f, f_total, col_tile, mask_cols):
    # Grid: (row_tiles, feature_tiles); feature axis is the reduction axis (last).
    k = pl.program_id(1)

    @pl.when(k == 0)
    def _init():
        acc_ref[...] = jnp.zeros_like(acc_ref)

    x = x_ref[...].astype(jnp.float32)
    if mask_cols:
        # Ragged tail along F: zero the out-of-range columns of the last block.
        col = jax.lax.broadcasted_iota(jnp.int32, x.shape, 1) + k * col_tile
        x = jnp.where(col < f_total, x, 0.0)

    # Row-wise partial sums, relayouted to a lane-dense (1, row_tile) slab (XLU).
    acc_ref[...] += jnp.sum(x, axis=1)[None, :]

    @pl.when(k == pl.num_programs(1) - 1)
    def _finalize():
        o_ref[...] = (acc_ref[...] * inv_f).astype(o_ref.dtype)


def dimension_averaging(x: jax.Array) -> jax.Array:
    """Pallas implementation of torch.mean(x, dim=1, keepdim=True) for 2-D x."""
    # TODO(synk): only the 2-D [N, F] layout used by DPMON is implemented;
    # higher-rank inputs (mean over axis 1 of an ND tensor) are not handled here.
    assert x.ndim == 2, "DimensionAveraging kernel expects a 2-D [N, F] input"
    n, f = x.shape
    itemsize = jnp.dtype(x.dtype).itemsize
    total_bytes = n * f * itemsize

    # ---- Fast path: small arrays fit in VMEM as one block (no grid at all). ----
    if total_bytes <= _FAST_PATH_BYTES:
        return pl.pallas_call(
            _dim_avg_small_kernel,
            out_shape=jax.ShapeDtypeStruct((n, 1), x.dtype),
        )(x)

    # ---- Tiled, HBM-streaming path. ----
    row_bytes = f * itemsize
    if _LANE * row_bytes <= _TARGET_TILE_BYTES:
        # Full feature dim fits in a tile: tile only over rows.
        col_tile = f
        row_tile = min(_round_down(_TARGET_TILE_BYTES // row_bytes, _LANE),
                       _round_up(n, _LANE))
    else:
        # Very wide F: fix the row tile and also tile the feature axis.
        row_tile = _LANE
        col_tile = min(_round_down(_TARGET_TILE_BYTES // (row_tile * itemsize), _LANE),
                       _round_up(f, _LANE))

    ni = pl.cdiv(n, row_tile)   # parallel axis (rows) -> shards across TensorCores
    nk = pl.cdiv(f, col_tile)   # reduction axis (features), kept last

    kernel = functools.partial(
        _dim_avg_tiled_kernel,
        inv_f=1.0 / f,
        f_total=f,
        col_tile=col_tile,
        mask_cols=(f % col_tile != 0),
    )

    out2d = pl.pallas_call(
        kernel,
        out_shape=jax.ShapeDtypeStruct((ni, row_tile), x.dtype),
        grid_spec=pltpu.PrefetchScalarGridSpec(
            num_scalar_prefetch=0,
            grid=(ni, nk),
            in_specs=[pl.BlockSpec((row_tile, col_tile), lambda i, k: (i, k))],
            out_specs=pl.BlockSpec((1, row_tile), lambda i, k: (i, 0)),
            scratch_shapes=[pltpu.VMEM((1, row_tile), jnp.float32)],
        ),
        compiler_params=pltpu.CompilerParams(
            dimension_semantics=("parallel", "arbitrary"),
            vmem_limit_bytes=_VMEM_LIMIT_BYTES,
        ),
    )(x)

    # Lane-dense (ni, row_tile) slab -> (N, 1); rows beyond N (ragged tail) are dropped.
    return out2d.reshape(ni * row_tile)[:n].reshape(n, 1)


if __name__ == "__main__":
    key = jax.random.PRNGKey(0)
    k1, k2, k3 = jax.random.split(key, 3)

    # 1) Small input consistent with the module's typical use -> fast single-block path.
    x_small = jax.random.normal(k1, (64, 128), dtype=jnp.float32)
    out_small = jax.block_until_ready(dimension_averaging(x_small))
    ref_small = jnp.mean(x_small, axis=1, keepdims=True)
    assert out_small.shape == (64, 1)
    assert jnp.allclose(out_small, ref_small, atol=1e-5, rtol=1e-5)

    # 2) Larger, ragged row count -> tiled path with lane-dense output (3 row tiles).
    x_tiled = jax.random.normal(k2, (4100, 512), dtype=jnp.float32)
    out_tiled = jax.block_until_ready(dimension_averaging(x_tiled))
    ref_tiled = jnp.mean(x_tiled, axis=1, keepdims=True)
    assert out_tiled.shape == (4100, 1)
    assert jnp.allclose(out_tiled, ref_tiled, atol=1e-5, rtol=1e-5)

    # 3) Wide feature dim -> 2-D grid with f32 accumulator + ragged-column masking.
    x_wide = jax.random.normal(k3, (256, 12000), dtype=jnp.float32)
    out_wide = jax.block_until_ready(dimension_averaging(x_wide))
    ref_wide = jnp.mean(x_wide, axis=1, keepdims=True)
    assert out_wide.shape == (256, 1)
    assert jnp.allclose(out_wide, ref_wide, atol=1e-5, rtol=1e-5)

    print("KERNEL_OK")
</pallas_src>

<mosaic_0001>
module attributes {stable_mosaic.version = 11 : i64} {
  func.func @_dim_avg_small_kernel(%arg0: memref<64x128xf32, #tpu.memory_space<vmem>>, %arg1: memref<64x1xf32, #tpu.memory_space<vmem>>) attributes {dimension_semantics = [], scalar_prefetch = 0 : i64, scratch_operands = 0 : i64, tpu.core_type = #tpu.core_type<tc>} {
    %c0 = arith.constant 0 : index
    %c0_0 = arith.constant 0 : index
    %0 = vector.load %arg0[%c0, %c0_0] : memref<64x128xf32, #tpu.memory_space<vmem>>, vector<64x128xf32>
    %cst = arith.constant dense<0.000000e+00> : vector<64xf32>
    %1 = vector.multi_reduction <add>, %0, %cst [1] : vector<64x128xf32> to vector<64xf32>
    %2 = vector.shape_cast %1 : vector<64xf32> to vector<64x1xf32>
    %cst_1 = arith.constant 1.280000e+02 : f32
    %3 = vector.broadcast %cst_1 : f32 to vector<64x1xf32>
    %4 = arith.divf %2, %3 : vector<64x1xf32>
    %c0_2 = arith.constant 0 : index
    %c0_3 = arith.constant 0 : index
    %5 = vector.load %arg1[%c0_2, %c0_3] : memref<64x1xf32, #tpu.memory_space<vmem>>, vector<64x1xf32>
    tpu.vector_store %arg1[%c0_2, %c0_3], %4 {strides = array<i32>} : memref<64x1xf32, #tpu.memory_space<vmem>>, vector<64x1xf32>,
    return
  }
}

</mosaic_0001>

<llo_original>
// kernel: tpu_custom_call.1
$region0: #{tpu_custom_call.1}
  #allocation0 [shape = 'u32[]', space=smem, size = 0x4, offset = 0x4, fixed_abs, tag = 'smem constant byte address 0x4 - core index']
  #allocation1 [shape = 'u32[144,128]{1,0:T(1,128)}', space=vmem, size = 0x12000, scoped, tag = 'internal scratch']
  %s0 = inlined_call_operand.hbm [shape: f32[64,128], index: 0, kind: input, shape index: {}]
  %s1 = inlined_call_operand.vmem [shape: f32[64,1], index: 1, kind: output, shape index: {}]
  %s2 = sld [smem:[#allocation0]]
  $region18: #{tpu_custom_call.1} parent=0
    _
  %s4 = ssub.s32 1, %s2
  %s5 = scalar_select 0, %s4, %s2
  $region1: #{tpu_custom_call.1} parent=0
    #allocation2 [shape = 'u8[32768]{0}', space=vmem, size = 0x8000, scoped, tag = 'input window, operand 0, single buffered']
    #allocation3 [shape = 's32[1]{0}', space=sflag, size = 0x4, scoped, tag = 'scoped memory for tpu_custom_call.1']
    %6 = vsyncpa [#allocation3], 0
    // Predicated region
    $region2: #{tpu_custom_call.1} parent=1 // pred_check
      _
    $region3: #{tpu_custom_call.1} parent=1 // pred_check_branch
      %8 = sbr.rel (0) target = $region5
    $region4: #{tpu_custom_call.1} parent=1 // pred_region
      %s10 = ssub.s32 1024, 1024
      %11 = vsyncadd [#allocation3], %s10
      %s12 = sshll.u32 [#allocation2], 4
      %s13 = int_to_ptr.vmem [resolvable:$true] %s12
      %18 = dma.hbm_to_vmem [thread:$0]  %s0, 1024, %s13, [#allocation3], 128, 128, 8
    $region5: #{tpu_custom_call.1} parent=1 // pred_fallthru
      _
    // Predicated region
    $region6: #{tpu_custom_call.1} parent=1 // pred_check
      _
    $region7: #{tpu_custom_call.1} parent=1 // pred_check_branch
      %20 = sbr.rel (0) target = $region9
    $region8: #{tpu_custom_call.1} parent=1 // pred_region
      %21 = dma.done [#allocation3], 1024
    $region9: #{tpu_custom_call.1} parent=1 // pred_fallthru
      _
    %v22 = vld [vmem:[#allocation2] sm:$0xff]
    %v23 = vld [vmem:[#allocation2 + $0x8] sm:$0xff]
    %v24 = vld [vmem:[#allocation2 + $0x10] sm:$0xff]
    %v25 = vld [vmem:[#allocation2 + $0x18] sm:$0xff]
    %v26 = vld [vmem:[#allocation2 + $0x20] sm:$0xff]
    %v27 = vld [vmem:[#allocation2 + $0x28] sm:$0xff]
    %v28 = vld [vmem:[#allocation2 + $0x30] sm:$0xff]
    %v29 = vld [vmem:[#allocation2 + $0x38] sm:$0xff]
    %30 = vadd.xlane.f32.xlu0 %v22
    %v31 = vpop.xlane.xlu0 %30
    %32 = vadd.xlane.f32.xlu0 %v23
    %v33 = vpop.xlane.xlu0 %32
    %34 = vadd.xlane.f32.xlu0 %v24
    %v35 = vpop.xlane.xlu0 %34
    %36 = vadd.xlane.f32.xlu0 %v25
    %v37 = vpop.xlane.xlu0 %36
    %38 = vadd.xlane.f32.xlu0 %v26
    %v39 = vpop.xlane.xlu0 %38
    %40 = vadd.xlane.f32.xlu0 %v27
    %v41 = vpop.xlane.xlu0 %40
    %42 = vadd.xlane.f32.xlu0 %v28
    %v43 = vpop.xlane.xlu0 %42
    %44 = vadd.xlane.f32.xlu0 %v29
    %v45 = vpop.xlane.xlu0 %44
    %v46 = vrcp.pop 128.0
    %v47 = vmul.f32 %v31, %v46
    %v48 = vmul.f32 %v33, %v46
    %v49 = vmul.f32 %v35, %v46
    %v50 = vmul.f32 %v37, %v46
    %v51 = vmul.f32 %v39, %v46
    %v52 = vmul.f32 %v41, %v46
    %v53 = vmul.f32 %v43, %v46
    %v54 = vmul.f32 %v45, %v46
    %vm55 = vcmask 7168
    %56 = vst.msk [vmem:[%s1] sm:$0xff] %vm55, %v47
    %57 = vst.msk [vmem:[%s1 + $0x8] sm:$0xff] %vm55, %v48
    %58 = vst.msk [vmem:[%s1 + $0x10] sm:$0xff] %vm55, %v49
    %59 = vst.msk [vmem:[%s1 + $0x18] sm:$0xff] %vm55, %v50
    %60 = vst.msk [vmem:[%s1 + $0x20] sm:$0xff] %vm55, %v51
    %61 = vst.msk [vmem:[%s1 + $0x28] sm:$0xff] %vm55, %v52
    %62 = vst.msk [vmem:[%s1 + $0x30] sm:$0xff] %vm55, %v53
    %63 = vst.msk [vmem:[%s1 + $0x38] sm:$0xff] %vm55, %v54
    // Predicated region
    $region10: #{tpu_custom_call.1} parent=1 // pred_check
      _
    $region11: #{tpu_custom_call.1} parent=1 // pred_check_branch
      %65 = sbr.rel (0) target = $region13
    $region12: #{tpu_custom_call.1} parent=1 // pred_region
      _
    $region13: #{tpu_custom_call.1} parent=1 // pred_fallthru
      _
    // Predicated region
    $region14: #{tpu_custom_call.1} parent=1 // pred_check
      _
    $region15: #{tpu_custom_call.1} parent=1 // pred_check_branch
      %67 = sbr.rel (0) target = $region17
    $region16: #{tpu_custom_call.1} parent=1 // pred_region
      _
    $region17: #{tpu_custom_call.1} parent=1 // pred_fallthru
      _
    %68 = vsyncpa [#allocation3], 1

</llo_original>
